<compile_context>
chip_gen: v7x
topology: tpu7x:2x2x1
jax: 0.10.0
libtpu: 0.0.40
codegen_flags: <defaults>
</compile_context>

<pallas_src>
import functools
import math

import jax
import jax.numpy as jnp
from jax.experimental import pallas as pl
from jax.experimental.pallas import tpu as pltpu


# ----------------------------------------------------------------------------
# Kernel 1: fused 3x3 Sobel features on a zero-padded image.
#   in : padded target  [B, H+2, W+2]   (one image per grid step)
#   out: thetas map     [B, H, W]   = sobel magnitude / 8   (kornia normalized)
#        edge magnitude [B, H, W]   = sobel magnitude of log(1 + target)
# TODO(synk): for >=1080p images tile the H axis (halo rows) instead of
# whole-image blocks and/or raise vmem_limit_bytes (v7x has 64 MiB VMEM).
# ----------------------------------------------------------------------------
def _edge_feats_kernel(x_ref, thetas_ref, edge_ref):
    _, H, W = thetas_ref.shape
    x = x_ref[0]                                           # (H+2, W+2)

    def sobel_mag(img):
        gx = (img[0:H, 2:W + 2] - img[0:H, 0:W]
              + 2.0 * (img[1:H + 1, 2:W + 2] - img[1:H + 1, 0:W])
              + img[2:H + 2, 2:W + 2] - img[2:H + 2, 0:W])
        gy = (img[0:H, 0:W] + 2.0 * img[0:H, 1:W + 1] + img[0:H, 2:W + 2]
              - img[2:H + 2, 0:W] - 2.0 * img[2:H + 2, 1:W + 1]
              - img[2:H + 2, 2:W + 2])
        return jnp.sqrt(gx * gx + gy * gy + 1e-6)

    thetas_ref[0] = sobel_mag(x) * (1.0 / 8.0)
    # log-preprocessed magnitude for the (Canny stand-in) edge mask; padded
    # zeros stay zero under log(1+x), so padding order does not matter.
    edge_ref[0] = sobel_mag(jnp.log(1.0 + jnp.maximum(x, 0.0)))


def edge_features(img):
    """img: [B, H, W] f32 -> (thetas=[B,H,W], edge_mag=[B,H,W])."""
    B, H, W = img.shape
    padded = jnp.pad(img.astype(jnp.float32), ((0, 0), (1, 1), (1, 1)))
    thetas, edge_mag = pl.pallas_call(
        _edge_feats_kernel,
        out_shape=(jax.ShapeDtypeStruct((B, H, W), jnp.float32),
                   jax.ShapeDtypeStruct((B, H, W), jnp.float32)),
        grid_spec=pltpu.PrefetchScalarGridSpec(
            num_scalar_prefetch=0,
            grid=(B,),
            in_specs=[pl.BlockSpec((1, H + 2, W + 2), lambda b: (b, 0, 0))],
            out_specs=[pl.BlockSpec((1, H, W), lambda b: (b, 0, 0))] * 2,
        ),
        compiler_params=pltpu.CompilerParams(
            dimension_semantics=("parallel",)),
    )(padded)
    return thetas, edge_mag


# ----------------------------------------------------------------------------
# Kernel 2: fused ranking-pair loss with resident VMEM accumulators.
#   Inputs : iA, iB, tA, tB  -- each [B, rows, 128]  (rows % tile_rows == 0)
#   Outputs: lane-wide partial sums eq, uneq -- each [B, 1, 128]
# Scale, ratio, labels, mask_eq, equal/unequal losses and the accumulation all
# happen in one streaming pass; the cross-lane reduce runs once per image in a
# pl.when(last) epilogue with a lane-dense (1,1,128) store.
# ----------------------------------------------------------------------------
def _pair_loss_kernel(ia_ref, ib_ref, ta_ref, tb_ref, eq_ref, uneq_ref,
                      eq_acc, uneq_acc, *, sigma):
    k = pl.program_id(1)

    @pl.when(k == 0)
    def _():
        eq_acc[...] = jnp.zeros_like(eq_acc)
        uneq_acc[...] = jnp.zeros_like(uneq_acc)

    scale = 80.0 / 250.0                                   # inputs / (250/80)
    ia = ia_ref[...] * scale                               # (1, R, 128)
    ib = ib_ref[...] * scale
    ta = ta_ref[...]
    tb = tb_ref[...]

    ratio = (ta + 1e-6) / (tb + 1e-6)
    hi = 1.0 + sigma
    lo = 1.0 / (1.0 + sigma)
    is_eq = jnp.logical_and(ratio < hi, ratio > lo)
    labels = (jnp.where(ratio >= hi, 1.0, 0.0)
              + jnp.where(ratio <= lo, -1.0, 0.0))

    d = ia - ib
    eq_acc[...] += jnp.where(is_eq, d * d, 0.0)
    x = (-d) * labels
    softplus = jnp.maximum(x, 0.0) + jnp.log(1.0 + jnp.exp(-jnp.abs(x)))
    uneq_acc[...] += jnp.where(is_eq, 0.0, softplus)

    @pl.when(k == pl.num_programs(1) - 1)
    def _():
        eq_ref[...] = jnp.sum(eq_acc[...], axis=1, keepdims=True)
        uneq_ref[...] = jnp.sum(uneq_acc[...], axis=1, keepdims=True)


_MAX_ROWS_PER_TILE = 512            # 512*128 f32 = 256 KiB per stream per tile


def _pair_tiling(n_pairs):
    rows_raw = -(-n_pairs // 128)
    if rows_raw <= _MAX_ROWS_PER_TILE:
        rows = ((rows_raw + 7) // 8) * 8
        tile_rows = rows
    else:
        tile_rows = _MAX_ROWS_PER_TILE
        rows = -(-rows_raw // tile_rows) * tile_rows
    return rows, tile_rows


def pair_loss_sums(iA, iB, tA, tB, *, sigma):
    """All inputs [B, N] f32. Returns per-image (eq_sum, uneq_sum), each [B]."""
    B, N = iA.shape
    rows, R = _pair_tiling(N)
    npad = rows * 128

    def pad(a, cval):
        a = jnp.pad(a.astype(jnp.float32), ((0, 0), (0, npad - N)),
                    constant_values=cval)
        return a.reshape(B, rows, 128)

    ia = pad(iA, 0.0)
    ib = pad(iB, 0.0)
    ta = pad(tA, 1.0)        # ratio == 1 on padded entries -> zero contribution
    tb = pad(tB, 1.0)

    kernel = functools.partial(_pair_loss_kernel, sigma=sigma)
    eq, uneq = pl.pallas_call(
        kernel,
        out_shape=(jax.ShapeDtypeStruct((B, 1, 128), jnp.float32),
                   jax.ShapeDtypeStruct((B, 1, 128), jnp.float32)),
        grid_spec=pltpu.PrefetchScalarGridSpec(
            num_scalar_prefetch=0,
            grid=(B, rows // R),
            in_specs=[pl.BlockSpec((1, R, 128), lambda b, k: (b, k, 0))] * 4,
            out_specs=[pl.BlockSpec((1, 1, 128), lambda b, k: (b, 0, 0))] * 2,
            scratch_shapes=[pltpu.VMEM((1, R, 128), jnp.float32),
                            pltpu.VMEM((1, R, 128), jnp.float32)],
        ),
        compiler_params=pltpu.CompilerParams(
            dimension_semantics=("parallel", "arbitrary")),
    )(ia, ib, ta, tb)
    # Tiny host-side lane reduce (B*128 elements).
    return jnp.sum(eq[:, 0, :], axis=-1), jnp.sum(uneq[:, 0, :], axis=-1)


# ----------------------------------------------------------------------------
# Plain-JAX glue: align_corners=True bilinear resize (F.interpolate).
# ----------------------------------------------------------------------------
def _resize_bilinear_align_corners(x, out_h, out_w):
    b, c, h, w = x.shape
    if (h, w) == (out_h, out_w):
        return x
    ys = jnp.linspace(0.0, h - 1.0, out_h)
    xs = jnp.linspace(0.0, w - 1.0, out_w)
    y0 = jnp.floor(ys).astype(jnp.int32)
    x0 = jnp.floor(xs).astype(jnp.int32)
    y1 = jnp.minimum(y0 + 1, h - 1)
    x1 = jnp.minimum(x0 + 1, w - 1)
    wy = (ys - y0)[None, None, :, None]
    wx = (xs - x0)[None, None, None, :]

    def g(yi, xi):
        return x[:, :, yi, :][:, :, :, xi]

    top = g(y0, x0) * (1.0 - wx) + g(y0, x1) * wx
    bot = g(y1, x0) * (1.0 - wx) + g(y1, x1) * wx
    return top * (1.0 - wy) + bot * wy


# ----------------------------------------------------------------------------
# Plain-JAX glue: fixed-size edge-guided + random pair sampling (one image,
# vmapped over the batch).  Mirrors edgeGuidedSampling / randomSampling with
# static shapes; invalid pairs are neutralized (zero loss contribution) so the
# Pallas kernel needs no `valid` stream.
# ----------------------------------------------------------------------------
def _sample_pairs_one_image(key, inp, tgt, edge_mask, thetas, strict_mask,
                            *, point_pairs, random_direct=True):
    H, W = inp.shape
    S = point_pairs
    HW = H * W
    k_idx, k_dist, k_dir, k_r1, k_r2 = jax.random.split(key, 5)

    # --- edge-guided anchors ------------------------------------------------
    em_flat = jnp.logical_and(edge_mask, strict_mask).reshape(-1).astype(jnp.int32)
    minlen = jnp.sum(em_flat)
    has_edges = minlen > 0

    cums = jnp.cumsum(em_flat)
    r = jax.random.randint(k_idx, (S,), 0, jnp.maximum(minlen, 1))
    flat_idx = jnp.minimum(jnp.searchsorted(cums, r, side="right"), HW - 1)
    sample_h = flat_idx // W
    sample_w = flat_idx % W
    theta = thetas[sample_h, sample_w]

    dist = jax.random.randint(k_dist, (4, S), 2, 31).astype(jnp.float32)
    dist = dist * jnp.array([-1.0, -1.0, 1.0, 1.0], jnp.float32)[:, None]

    col_a = sample_w[None, :] + jnp.round(dist * jnp.cos(theta)[None, :]).astype(jnp.int32)
    row_a = sample_h[None, :] + jnp.round(dist * jnp.sin(theta)[None, :]).astype(jnp.int32)
    if random_direct:
        p = jax.random.uniform(k_dir, ())
        theta2 = ((theta + math.pi / 2) + math.pi) % (2.0 * math.pi) - math.pi
        col_b = sample_w[None, :] + jnp.round(dist * jnp.sin(theta2)[None, :]).astype(jnp.int32)
        row_b = sample_h[None, :] + jnp.round(dist * jnp.cos(theta2)[None, :]).astype(jnp.int32)
        use_a = p < 0.5
        col = jnp.where(use_a, col_a, col_b)
        row = jnp.where(use_a, row_a, row_b)
    else:
        col, row = col_a, row_a

    oob = (col < 0) | (col > W - 1) | (row < 0) | (row > H - 1)
    keep = jnp.logical_not(jnp.any(oob, axis=0))           # (S,)
    col = jnp.clip(col, 0, W - 1)
    row = jnp.clip(row, 0, H - 1)

    rowA = jnp.concatenate([row[0], row[1], row[2]])
    colA = jnp.concatenate([col[0], col[1], col[2]])
    rowB = jnp.concatenate([row[1], row[2], row[3]])
    colB = jnp.concatenate([col[1], col[2], col[3]])
    valid_e = jnp.tile(keep, 3) & has_edges                # (3S,)

    iA_e = inp[rowA, colA]
    iB_e = inp[rowB, colB]
    tA_e = tgt[rowA, colA]
    tB_e = tgt[rowB, colB]
    sample_num_e = jnp.sum(valid_e.astype(jnp.int32))

    # --- random sampling over strictly-valid pixels --------------------------
    # TODO(synk): original uses randperm (without replacement); this samples
    # uniformly with replacement to keep shapes static.
    sm_flat = strict_mask.reshape(-1).astype(jnp.int32)
    nvalid = jnp.sum(sm_flat)
    sample_num_r = jnp.minimum(sample_num_e, nvalid)
    cums2 = jnp.cumsum(sm_flat)
    r1 = jax.random.randint(k_r1, (3 * S,), 0, jnp.maximum(nvalid, 1))
    r2 = jax.random.randint(k_r2, (3 * S,), 0, jnp.maximum(nvalid, 1))
    idx1 = jnp.minimum(jnp.searchsorted(cums2, r1, side="right"), HW - 1)
    idx2 = jnp.minimum(jnp.searchsorted(cums2, r2, side="right"), HW - 1)
    inp_f = inp.reshape(-1)
    tgt_f = tgt.reshape(-1)
    iA_r = inp_f[idx1]
    iB_r = inp_f[idx2]
    tA_r = tgt_f[idx1]
    tB_r = tgt_f[idx2]
    valid_r = (jnp.arange(3 * S) < sample_num_r) & has_edges

    iA = jnp.concatenate([iA_e, iA_r])
    iB = jnp.concatenate([iB_e, iB_r])
    tA = jnp.concatenate([tA_e, tA_r])
    tB = jnp.concatenate([tB_e, tB_r])
    valid = jnp.concatenate([valid_e, valid_r])

    # Neutralize invalid pairs: d == 0 and ratio == 1  ->  eq and uneq terms
    # are exactly 0, so the kernel needs no validity mask or count stream.
    iA = jnp.where(valid, iA, 0.0)
    iB = jnp.where(valid, iB, 0.0)
    tA = jnp.where(valid, tA, 1.0)
    tB = jnp.where(valid, tB, 1.0)

    n_samples = sample_num_e + sample_num_r
    return iA, iB, tA, tB, n_samples


# ----------------------------------------------------------------------------
# Wrapper reproducing EdgeguidedRankingLoss.forward (default config:
# reweight_target=False, only_missing_area=False).
# ----------------------------------------------------------------------------
def edgeguided_ranking_loss(inputs, targets, images, depth_gt, key, *,
                            point_pairs=10000, sigma=0.03, alpha=1.0,
                            min_depth=0.001, max_depth=80.0,
                            random_direct=True, interpolate=True):
    B, _, H, W = inputs.shape
    if interpolate:
        targets = _resize_bilinear_align_corners(targets, H, W)
        images = _resize_bilinear_align_corners(images, H, W)
        depth_gt = _resize_bilinear_align_corners(depth_gt, H, W)

    inputs2d = inputs[:, 0].astype(jnp.float32)
    targets2d = targets[:, 0].astype(jnp.float32)
    depth2d = depth_gt[:, 0].astype(jnp.float32)

    strict_mask = jnp.logical_and(depth2d > min_depth, depth2d < max_depth)

    # thetas_img = kornia.filters.sobel(targets, normalized=True) magnitude;
    # TODO(synk): original uses CPU Canny (extract_edges, preprocess='log');
    # approximated with a per-image mean-thresholded Sobel magnitude of
    # log(1 + target).  Both maps come from ONE fused Pallas pass.
    thetas, edge_mag = edge_features(targets2d)
    edge_mask = edge_mag > jnp.mean(edge_mag, axis=(1, 2), keepdims=True)

    # TODO(synk): reweight_target=True and only_missing_area=True branches are
    # not implemented (module defaults are False).

    keys = jax.random.split(key, B)
    sample_fn = functools.partial(_sample_pairs_one_image,
                                  point_pairs=point_pairs,
                                  random_direct=random_direct)
    iA, iB, tA, tB, n_samples = jax.vmap(sample_fn)(
        keys, inputs2d, targets2d, edge_mask, thetas, strict_mask)

    eq, uneq = pair_loss_sums(iA, iB, tA, tB, sigma=sigma)
    cnt = n_samples.astype(jnp.float32)
    per_img = jnp.where(cnt > 0,
                        (alpha * eq + uneq) / jnp.maximum(cnt, 1.0),
                        0.0)
    loss = jnp.sum(per_img) / B
    return loss, jnp.sum(cnt) / B


# ----------------------------------------------------------------------------
# Pure-JAX references for kernel-level correctness checks.
# ----------------------------------------------------------------------------
def _reference_edge_features(img):
    def mag(x):
        xp = jnp.pad(x, ((0, 0), (1, 1), (1, 1)))
        _, H, W = x.shape
        gx = (xp[:, 0:H, 2:W + 2] - xp[:, 0:H, 0:W]
              + 2.0 * (xp[:, 1:H + 1, 2:W + 2] - xp[:, 1:H + 1, 0:W])
              + xp[:, 2:H + 2, 2:W + 2] - xp[:, 2:H + 2, 0:W])
        gy = (xp[:, 0:H, 0:W] + 2.0 * xp[:, 0:H, 1:W + 1] + xp[:, 0:H, 2:W + 2]
              - xp[:, 2:H + 2, 0:W] - 2.0 * xp[:, 2:H + 2, 1:W + 1]
              - xp[:, 2:H + 2, 2:W + 2])
        return jnp.sqrt(gx * gx + gy * gy + 1e-6)

    return mag(img) / 8.0, mag(jnp.log(1.0 + jnp.maximum(img, 0.0)))


def _reference_pair_sums(iA, iB, tA, tB, *, sigma):
    scale = 80.0 / 250.0
    ia = iA * scale
    ib = iB * scale
    ratio = (tA + 1e-6) / (tB + 1e-6)
    hi = 1.0 + sigma
    lo = 1.0 / (1.0 + sigma)
    is_eq = jnp.logical_and(ratio < hi, ratio > lo)
    labels = (jnp.where(ratio >= hi, 1.0, 0.0)
              + jnp.where(ratio <= lo, -1.0, 0.0))
    d = ia - ib
    eq = jnp.sum(jnp.where(is_eq, d * d, 0.0), axis=1)
    uneq = jnp.sum(jnp.where(is_eq, 0.0, jnp.logaddexp(0.0, -d * labels)), axis=1)
    return eq, uneq


if __name__ == "__main__":
    B, H, W = 2, 16, 16          # prediction spatial size
    Ht, Wt = 24, 24              # target / image / gt size (exercises interpolate)
    point_pairs = 32

    key = jax.random.PRNGKey(0)
    k1, k2, k3, k4, kloss, kpair = jax.random.split(key, 6)

    # smooth-ish positive depth maps so the Sobel edge mask is non-trivial
    yy, xx = jnp.meshgrid(jnp.linspace(0.0, 1.0, Ht),
                          jnp.linspace(0.0, 1.0, Wt), indexing="ij")
    base = 2.0 + 3.0 * yy + 1.5 * jnp.sin(6.0 * xx)
    targets = base[None, None] + 0.3 * jax.random.uniform(k1, (B, 1, Ht, Wt))
    depth_gt = base[None, None] + 0.3 * jax.random.uniform(k2, (B, 1, Ht, Wt))
    inputs = 2.0 + 8.0 * jax.random.uniform(k3, (B, 1, H, W))
    images = jax.random.uniform(k4, (B, 3, Ht, Wt))

    loss, avg_samples = edgeguided_ranking_loss(
        inputs, targets, images, depth_gt, kloss,
        point_pairs=point_pairs, sigma=0.03, alpha=1.0,
        min_depth=0.001, max_depth=80.0, interpolate=True)
    loss = jax.block_until_ready(loss)
    assert jnp.isfinite(loss), loss

    # --- kernel-level correctness checks vs pure-JAX references -------------
    t2d = _resize_bilinear_align_corners(targets, H, W)[:, 0].astype(jnp.float32)
    thetas_k, edge_k = edge_features(t2d)
    jax.block_until_ready(thetas_k)
    thetas_r, edge_r = _reference_edge_features(t2d)
    assert jnp.allclose(thetas_k, thetas_r, rtol=1e-5, atol=1e-5)
    assert jnp.allclose(edge_k, edge_r, rtol=1e-5, atol=1e-5)

    kp = jax.random.split(kpair, 4)
    N = 300                       # non-multiple of 128: exercises padding path
    ia = 10.0 * jax.random.uniform(kp[0], (B, N)) - 2.0
    ib = 10.0 * jax.random.uniform(kp[1], (B, N)) - 2.0
    ta = 0.5 + 10.0 * jax.random.uniform(kp[2], (B, N))
    tb = 0.5 + 10.0 * jax.random.uniform(kp[3], (B, N))
    eq_k, uneq_k = pair_loss_sums(ia, ib, ta, tb, sigma=0.03)
    jax.block_until_ready(eq_k)
    eq_r, uneq_r = _reference_pair_sums(ia, ib, ta, tb, sigma=0.03)
    assert jnp.allclose(eq_k, eq_r, rtol=1e-4, atol=1e-4), (eq_k, eq_r)
    assert jnp.allclose(uneq_k, uneq_r, rtol=1e-4, atol=1e-4), (uneq_k, uneq_r)

    print("KERNEL_OK")
</pallas_src>

<mosaic_0001>
module attributes {stable_mosaic.version = 11 : i64} {
  func.func @_edge_feats_kernel(%arg0: i32, %arg1: memref<1x18x18xf32, #tpu.memory_space<vmem>>, %arg2: memref<1x16x16xf32, #tpu.memory_space<vmem>>, %arg3: memref<1x16x16xf32, #tpu.memory_space<vmem>>) attributes {dimension_semantics = [#tpu.dimension_semantics<parallel>], iteration_bounds = array<i64: 2>, scalar_prefetch = 0 : i64, scratch_operands = 0 : i64, tpu.core_type = #tpu.core_type<tc>, window_params = [{transform_indices = @transform_0, window_bounds = array<i64: 1, 18, 18>}, {transform_indices = @transform_1, window_bounds = array<i64: 1, 16, 16>}, {transform_indices = @transform_2, window_bounds = array<i64: 1, 16, 16>}]} {
    %c0 = arith.constant 0 : index
    %c0_0 = arith.constant 0 : index
    %c0_1 = arith.constant 0 : index
    %0 = vector.load %arg1[%c0, %c0_0, %c0_1] : memref<1x18x18xf32, #tpu.memory_space<vmem>>, vector<1x18x18xf32>
    %1 = vector.shape_cast %0 : vector<1x18x18xf32> to vector<18x18xf32>
    %2 = vector.extract_strided_slice %1 {offsets = [0, 2], sizes = [16, 16], strides = [1, 1]} : vector<18x18xf32> to vector<16x16xf32>
    %3 = vector.extract_strided_slice %1 {offsets = [0, 0], sizes = [16, 16], strides = [1, 1]} : vector<18x18xf32> to vector<16x16xf32>
    %4 = arith.subf %2, %3 : vector<16x16xf32>
    %5 = vector.extract_strided_slice %1 {offsets = [1, 2], sizes = [16, 16], strides = [1, 1]} : vector<18x18xf32> to vector<16x16xf32>
    %6 = vector.extract_strided_slice %1 {offsets = [1, 0], sizes = [16, 16], strides = [1, 1]} : vector<18x18xf32> to vector<16x16xf32>
    %7 = arith.subf %5, %6 : vector<16x16xf32>
    %cst = arith.constant 2.000000e+00 : f32
    %8 = vector.broadcast %cst : f32 to vector<16x16xf32>
    %9 = arith.mulf %8, %7 : vector<16x16xf32>
    %10 = arith.addf %4, %9 : vector<16x16xf32>
    %11 = vector.extract_strided_slice %1 {offsets = [2, 2], sizes = [16, 16], strides = [1, 1]} : vector<18x18xf32> to vector<16x16xf32>
    %12 = arith.addf %10, %11 : vector<16x16xf32>
    %13 = vector.extract_strided_slice %1 {offsets = [2, 0], sizes = [16, 16], strides = [1, 1]} : vector<18x18xf32> to vector<16x16xf32>
    %14 = arith.subf %12, %13 : vector<16x16xf32>
    %15 = vector.extract_strided_slice %1 {offsets = [0, 0], sizes = [16, 16], strides = [1, 1]} : vector<18x18xf32> to vector<16x16xf32>
    %16 = vector.extract_strided_slice %1 {offsets = [0, 1], sizes = [16, 16], strides = [1, 1]} : vector<18x18xf32> to vector<16x16xf32>
    %cst_2 = arith.constant 2.000000e+00 : f32
    %17 = vector.broadcast %cst_2 : f32 to vector<16x16xf32>
    %18 = arith.mulf %17, %16 : vector<16x16xf32>
    %19 = arith.addf %15, %18 : vector<16x16xf32>
    %20 = vector.extract_strided_slice %1 {offsets = [0, 2], sizes = [16, 16], strides = [1, 1]} : vector<18x18xf32> to vector<16x16xf32>
    %21 = arith.addf %19, %20 : vector<16x16xf32>
    %22 = vector.extract_strided_slice %1 {offsets = [2, 0], sizes = [16, 16], strides = [1, 1]} : vector<18x18xf32> to vector<16x16xf32>
    %23 = arith.subf %21, %22 : vector<16x16xf32>
    %24 = vector.extract_strided_slice %1 {offsets = [2, 1], sizes = [16, 16], strides = [1, 1]} : vector<18x18xf32> to vector<16x16xf32>
    %cst_3 = arith.constant 2.000000e+00 : f32
    %25 = vector.broadcast %cst_3 : f32 to vector<16x16xf32>
    %26 = arith.mulf %25, %24 : vector<16x16xf32>
    %27 = arith.subf %23, %26 : vector<16x16xf32>
    %28 = vector.extract_strided_slice %1 {offsets = [2, 2], sizes = [16, 16], strides = [1, 1]} : vector<18x18xf32> to vector<16x16xf32>
    %29 = arith.subf %27, %28 : vector<16x16xf32>
    %30 = arith.mulf %14, %14 : vector<16x16xf32>
    %31 = arith.mulf %29, %29 : vector<16x16xf32>
    %32 = arith.addf %30, %31 : vector<16x16xf32>
    %cst_4 = arith.constant 9.99999997E-7 : f32
    %33 = vector.broadcast %cst_4 : f32 to vector<16x16xf32>
    %34 = arith.addf %32, %33 : vector<16x16xf32>
    %35 = math.sqrt %34 : vector<16x16xf32>
    %cst_5 = arith.constant 1.250000e-01 : f32
    %36 = vector.broadcast %cst_5 : f32 to vector<16x16xf32>
    %37 = arith.mulf %35, %36 : vector<16x16xf32>
    %c0_6 = arith.constant 0 : index
    %c0_7 = arith.constant 0 : index
    %c0_8 = arith.constant 0 : index
    %38 = vector.load %arg2[%c0_6, %c0_7, %c0_8] : memref<1x16x16xf32, #tpu.memory_space<vmem>>, vector<1x16x16xf32>
    %39 = vector.shape_cast %38 : vector<1x16x16xf32> to vector<16x16xf32>
    %40 = vector.shape_cast %37 : vector<16x16xf32> to vector<1x16x16xf32>
    tpu.vector_store %arg2[%c0_6, %c0_7, %c0_8], %40 {strides = array<i32>} : memref<1x16x16xf32, #tpu.memory_space<vmem>>, vector<1x16x16xf32>,
    %cst_9 = arith.constant 0.000000e+00 : f32
    %41 = vector.broadcast %cst_9 : f32 to vector<18x18xf32>
    %42 = arith.maximumf %1, %41 : vector<18x18xf32>
    %cst_10 = arith.constant 1.000000e+00 : f32
    %43 = vector.broadcast %cst_10 : f32 to vector<18x18xf32>
    %44 = arith.addf %43, %42 : vector<18x18xf32>
    %45 = math.log %44 : vector<18x18xf32>
    %46 = vector.extract_strided_slice %45 {offsets = [0, 2], sizes = [16, 16], strides = [1, 1]} : vector<18x18xf32> to vector<16x16xf32>
    %47 = vector.extract_strided_slice %45 {offsets = [0, 0], sizes = [16, 16], strides = [1, 1]} : vector<18x18xf32> to vector<16x16xf32>
    %48 = arith.subf %46, %47 : vector<16x16xf32>
    %49 = vector.extract_strided_slice %45 {offsets = [1, 2], sizes = [16, 16], strides = [1, 1]} : vector<18x18xf32> to vector<16x16xf32>
    %50 = vector.extract_strided_slice %45 {offsets = [1, 0], sizes = [16, 16], strides = [1, 1]} : vector<18x18xf32> to vector<16x16xf32>
    %51 = arith.subf %49, %50 : vector<16x16xf32>
    %cst_11 = arith.constant 2.000000e+00 : f32
    %52 = vector.broadcast %cst_11 : f32 to vector<16x16xf32>
    %53 = arith.mulf %52, %51 : vector<16x16xf32>
    %54 = arith.addf %48, %53 : vector<16x16xf32>
    %55 = vector.extract_strided_slice %45 {offsets = [2, 2], sizes = [16, 16], strides = [1, 1]} : vector<18x18xf32> to vector<16x16xf32>
    %56 = arith.addf %54, %55 : vector<16x16xf32>
    %57 = vector.extract_strided_slice %45 {offsets = [2, 0], sizes = [16, 16], strides = [1, 1]} : vector<18x18xf32> to vector<16x16xf32>
    %58 = arith.subf %56, %57 : vector<16x16xf32>
    %59 = vector.extract_strided_slice %45 {offsets = [0, 0], sizes = [16, 16], strides = [1, 1]} : vector<18x18xf32> to vector<16x16xf32>
    %60 = vector.extract_strided_slice %45 {offsets = [0, 1], sizes = [16, 16], strides = [1, 1]} : vector<18x18xf32> to vector<16x16xf32>
    %cst_12 = arith.constant 2.000000e+00 : f32
    %61 = vector.broadcast %cst_12 : f32 to vector<16x16xf32>
    %62 = arith.mulf %61, %60 : vector<16x16xf32>
    %63 = arith.addf %59, %62 : vector<16x16xf32>
    %64 = vector.extract_strided_slice %45 {offsets = [0, 2], sizes = [16, 16], strides = [1, 1]} : vector<18x18xf32> to vector<16x16xf32>
    %65 = arith.addf %63, %64 : vector<16x16xf32>
    %66 = vector.extract_strided_slice %45 {offsets = [2, 0], sizes = [16, 16], strides = [1, 1]} : vector<18x18xf32> to vector<16x16xf32>
    %67 = arith.subf %65, %66 : vector<16x16xf32>
    %68 = vector.extract_strided_slice %45 {offsets = [2, 1], sizes = [16, 16], strides = [1, 1]} : vector<18x18xf32> to vector<16x16xf32>
    %cst_13 = arith.constant 2.000000e+00 : f32
    %69 = vector.broadcast %cst_13 : f32 to vector<16x16xf32>
    %70 = arith.mulf %69, %68 : vector<16x16xf32>
    %71 = arith.subf %67, %70 : vector<16x16xf32>
    %72 = vector.extract_strided_slice %45 {offsets = [2, 2], sizes = [16, 16], strides = [1, 1]} : vector<18x18xf32> to vector<16x16xf32>
    %73 = arith.subf %71, %72 : vector<16x16xf32>
    %74 = arith.mulf %58, %58 : vector<16x16xf32>
    %75 = arith.mulf %73, %73 : vector<16x16xf32>
    %76 = arith.addf %74, %75 : vector<16x16xf32>
    %cst_14 = arith.constant 9.99999997E-7 : f32
    %77 = vector.broadcast %cst_14 : f32 to vector<16x16xf32>
    %78 = arith.addf %76, %77 : vector<16x16xf32>
    %79 = math.sqrt %78 : vector<16x16xf32>
    %c0_15 = arith.constant 0 : index
    %c0_16 = arith.constant 0 : index
    %c0_17 = arith.constant 0 : index
    %80 = vector.load %arg3[%c0_15, %c0_16, %c0_17] : memref<1x16x16xf32, #tpu.memory_space<vmem>>, vector<1x16x16xf32>
    %81 = vector.shape_cast %80 : vector<1x16x16xf32> to vector<16x16xf32>
    %82 = vector.shape_cast %79 : vector<16x16xf32> to vector<1x16x16xf32>
    tpu.vector_store %arg3[%c0_15, %c0_16, %c0_17], %82 {strides = array<i32>} : memref<1x16x16xf32, #tpu.memory_space<vmem>>, vector<1x16x16xf32>,
    return
  }
  func.func @transform_0(%arg0: i32) -> (i32, i32, i32) {
    %c0_i32 = arith.constant 0 : i32
    %c0_i32_0 = arith.constant 0 : i32
    %c0_i32_1 = arith.constant 0 : i32
    return %arg0, %c0_i32, %c0_i32_0 : i32, i32, i32
  }
  func.func @transform_1(%arg0: i32) -> (i32, i32, i32) {
    %c0_i32 = arith.constant 0 : i32
    %c0_i32_0 = arith.constant 0 : i32
    %c0_i32_1 = arith.constant 0 : i32
    return %arg0, %c0_i32, %c0_i32_0 : i32, i32, i32
  }
  func.func @transform_2(%arg0: i32) -> (i32, i32, i32) {
    %c0_i32 = arith.constant 0 : i32
    %c0_i32_0 = arith.constant 0 : i32
    %c0_i32_1 = arith.constant 0 : i32
    return %arg0, %c0_i32, %c0_i32_0 : i32, i32, i32
  }
}

</mosaic_0001>

<llo_original>
// kernel: tpu_custom_call.1
$region0: #{tpu_custom_call.1}
  #allocation0 [shape = 'u32[]', space=smem, size = 0x4, offset = 0x4, fixed_abs, tag = 'smem constant byte address 0x4 - core index']
  #allocation1 [shape = 'u32[144,128]{1,0:T(1,128)}', space=vmem, size = 0x12000, scoped, tag = 'internal scratch']
  %s0 = inlined_call_operand.vmem [shape: f32[2,18,18], index: 0, kind: input, shape index: {}]
  %s1 = inlined_call_operand.hbm [shape: f32[2,16,16], index: 1, kind: output, shape index: {0}]
  %s2 = inlined_call_operand.hbm [shape: f32[2,16,16], index: 2, kind: output, shape index: {1}]
  %3 = xla_tuple %s1, %s2
  %s4 = sld [smem:[#allocation0]]
  $region45: #{tpu_custom_call.1} parent=0
    _
  %s6 = ssub.s32 1, %s4
  %s7 = scalar_select 0, %s6, %s4
  $region1: #{tpu_custom_call.1} parent=0
    #allocation2 [shape = 'u8[16384]{0}', space=vmem, size = 0x4000, scoped, tag = 'output window, operand 0']
    #allocation3 [shape = 's32[2]{0}', space=sflag, size = 0x8, scoped, tag = 'scoped memory for tpu_custom_call.1']
    #allocation4 [shape = 'u8[16384]{0}', space=vmem, size = 0x4000, scoped, tag = 'output window, operand 1']
    #allocation5 [shape = 's32[2]{0}', space=sflag, size = 0x8, scoped, tag = 'scoped memory for tpu_custom_call.1']
    %8 = vsyncpa [#allocation3], 0
    %s9 = scalar_lea.sflag [#allocation3], 1
    %10 = vsyncpa %s9, 0
    %11 = vsyncpa [#allocation5], 0
    %s12 = scalar_lea.sflag [#allocation5], 1
    %13 = vsyncpa %s12, 0
    loop: start=0, step=1, limit=4
    $region2: #{tpu_custom_call.1} parent=1 // loop_pre_header
      _
    $region3: #{tpu_custom_call.1} parent=1 // loop_header
      %s15 = sphi 0, %s19
      %p16 = scmp.ge.s32.totalorder %s15, 4
      %s25 = sphi 0, %s27
      %s28 = sphi 0, %s25
      %s29 = sphi 0, %s28
      %s45 = sphi 0, %s29
      %s51 = sphi 0, %s53
      %s54 = sphi 0, %s51
      %s55 = sphi 0, %s54
      %s71 = sphi 0, %s55
      %s77 = sphi 0, %s79
      %s80 = sphi 0, %s77
      %s81 = sphi 0, %s80
      %s97 = sphi 0, %s81
    $region4: #{tpu_custom_call.1} parent=1 // loop_header_branch
      %18 = sbr.rel (%p16) target = $region8
    $region5: #{tpu_custom_call.1} parent=1 // loop_body
      %s20 = ssub.s32 %s15, 1
      %s21 = ssub.s32 %s15, 2
      %s22 = sadd.s32 %s15, 1
      %s23 = ssub.s32 %s15, %s22
      %p24 = scmp.eq.s32.totalorder %s23, 0
      %s26 = sadd.s32 %s25, 1
      %s27 = scalar_select %p24, %s25, %s26
      %p30 = pneg %p24
      %p31 = scmp.eq.s32.totalorder %s15, 1
      %p32 = por %p30, %p31
      %p33 = scmp.ne.s32.totalorder %s25, %s28
      %p34 = scmp.eq.s32.totalorder %s15, 0
      %p35 = por %p33, %p34
      %p36 = scmp.ne.s32.totalorder %s25, %s28
      %p37 = scmp.eq.s32.totalorder %s20, 1
      %p38 = por %p36, %p37
      %p39 = scmp.ne.s32.totalorder %s28, %s29
      %p40 = scmp.eq.s32.totalorder %s20, 0
      %p41 = por %p39, %p40
      %p42 = scmp.ne.s32.totalorder %s28, %s29
      %p43 = scmp.eq.s32.totalorder %s21, 1
      %p44 = por %p42, %p43
      %p46 = scmp.ne.s32.totalorder %s29, %s45
      %p47 = scmp.eq.s32.totalorder %s21, 0
      %p48 = por %p46, %p47
      %s49 = ssub.s32 %s15, %s22
      %p50 = scmp.eq.s32.totalorder %s49, 0
      %s52 = sadd.s32 %s51, 1
      %s53 = scalar_select %p50, %s51, %s52
      %p56 = pneg %p50
      %p57 = scmp.eq.s32.totalorder %s15, 1
      %p58 = por %p56, %p57
      %p59 = scmp.ne.s32.totalorder %s51, %s54
      %p60 = scmp.eq.s32.totalorder %s15, 0
      %p61 = por %p59, %p60
      %p62 = scmp.ne.s32.totalorder %s51, %s54
      %p63 = scmp.eq.s32.totalorder %s20, 1
      %p64 = por %p62, %p63
      %p65 = scmp.ne.s32.totalorder %s54, %s55
      %p66 = scmp.eq.s32.totalorder %s20, 0
      %p67 = por %p65, %p66
      %p68 = scmp.ne.s32.totalorder %s54, %s55
      %p69 = scmp.eq.s32.totalorder %s21, 1
      %p70 = por %p68, %p69
      %p72 = scmp.ne.s32.totalorder %s55, %s71
      %p73 = scmp.eq.s32.totalorder %s21, 0
      %p74 = por %p72, %p73
      %s75 = ssub.s32 %s15, %s22
      %p76 = scmp.eq.s32.totalorder %s75, 0
      %s78 = sadd.s32 %s77, 1
      %s79 = scalar_select %p76, %s77, %s78
      %p82 = pneg %p76
      %p83 = scmp.eq.s32.totalorder %s15, 1
      %p84 = por %p82, %p83
      %p85 = scmp.ne.s32.totalorder %s77, %s80
      %p86 = scmp.eq.s32.totalorder %s15, 0
      %p87 = por %p85, %p86
      %p88 = scmp.ne.s32.totalorder %s77, %s80
      %p89 = scmp.eq.s32.totalorder %s20, 1
      %p90 = por %p88, %p89
      %p91 = scmp.ne.s32.totalorder %s80, %s81
      %p92 = scmp.eq.s32.totalorder %s20, 0
      %p93 = por %p91, %p92
      %p94 = scmp.ne.s32.totalorder %s80, %s81
      %p95 = scmp.eq.s32.totalorder %s21, 1
      %p96 = por %p94, %p95
      %p98 = scmp.ne.s32.totalorder %s81, %s97
      %p99 = scmp.eq.s32.totalorder %s21, 0
      %p100 = por %p98, %p99
      %p101 = scmp.le.s32.totalorder 1, %s15
      %p102 = scmp.lt.s32.totalorder %s15, 3
      %p103 = pnand %p101, %p102
      %p104 = pneg %p103
      // Predicated region
      $region9: #{tpu_custom_call.1} parent=5 // pred_check
        _
      $region10: #{tpu_custom_call.1} parent=5 // pred_check_branch
        %106 = sbr.rel (%p103) target = $region12
      $region11: #{tpu_custom_call.1} parent=5 // pred_region
        %s107 = ssub.s32 %s15, 1
      $region12: #{tpu_custom_call.1} parent=5 // pred_fallthru
        _
      %p108 = scmp.lt.s32.totalorder %s15, 2
      // Predicated region
      $region13: #{tpu_custom_call.1} parent=5 // pred_check
        %p109 = pneg %p108
      $region14: #{tpu_custom_call.1} parent=5 // pred_check_branch
        %111 = sbr.rel (%p109) target = $region16
      $region15: #{tpu_custom_call.1} parent=5 // pred_region
        // Predicated region
        $region17: #{tpu_custom_call.1} parent=15 // pred_check
          %p112 = pneg %p35
        $region18: #{tpu_custom_call.1} parent=15 // pred_check_branch
          %114 = sbr.rel (%p112) target = $region20
        $region19: #{tpu_custom_call.1} parent=15 // pred_region
          %p115 = scmp.lt.s32.totalorder %s15, 1
          %s116 = scalar_select %p115, %s15, 1
          %s117 = smul.addr %s116, 3
          %s118 = smul.addr %s117, 8
          %s119 = scalar_lea.vmem %s0, %s118
        $region20: #{tpu_custom_call.1} parent=15 // pred_fallthru
          _
      $region16: #{tpu_custom_call.1} parent=5 // pred_fallthru
        _
      %p120 = scmp.le.s32.totalorder 1, %s15
      %p121 = scmp.lt.s32.totalorder %s15, 3
      %p122 = pnand %p120, %p121
      %p123 = pneg %p122
      // Predicated region
      $region21: #{tpu_custom_call.1} parent=5 // pred_check
        _
      $region22: #{tpu_custom_call.1} parent=5 // pred_check_branch
        %125 = sbr.rel (%p122) target = $region24
      $region23: #{tpu_custom_call.1} parent=5 // pred_region
        %s126 = ssub.s32 %s15, 1
        %p127 = scmp.lt.s32.totalorder %s20, 1
        %s128 = scalar_select %p127, %s20, 1
        %s129 = smul.addr %s128, 3
        %s130 = smul.addr %s129, 8
        %s131 = scalar_lea.vmem %s0, %s130
        %p132 = pneg %p41
        %p133 = pneg %p38
        %p134 = pneg %p67
        %p135 = pneg %p64
        %s136 = sand.u32 %s54, 1
        %s137 = scalar_lea.sflag [#allocation3], %s136
        %s138 = sand.u32 %s54, 1
        %s139 = smul.addr %s138, 16
        %s140 = scalar_lea.vmem [#allocation2], %s139
        %p141 = pneg %p93
        %p142 = pneg %p90
        %s143 = sand.u32 %s80, 1
        %s144 = scalar_lea.sflag [#allocation5], %s143
        %s145 = sand.u32 %s80, 1
        %s146 = smul.addr %s145, 16
        %s147 = scalar_lea.vmem [#allocation4], %s146
        %p148 = scmp.lt.s32.totalorder %s20, 1
        %s149 = scalar_select %p148, %s20, 1
        %s150 = smul.addr %s149, 3
        %s151 = smul.addr %s150, 8
        %s152 = scalar_lea.vmem %s0, %s151
        %v153 = vld [vmem:[%s152] sm:$0xff]
        %v154 = vld [vmem:[%s152 + $0x8] sm:$0xff]
        %v155 = vld [vmem:[%s152 + $0x10] sm:$0x3]
        %158 = vrot.lane.b32.xlu0 %v153, 2
        %v159 = vpop.permute.xlu0 %158
        %160 = vrot.lane.b32.xlu0 %v154, 2
        %v161 = vpop.permute.xlu0 %160
        %v164 = vsub.f32 %v153, %v159
        %v165 = vsub.f32 %v154, %v161
        %167 = vrot.lane.b32.xlu0 %v155, 2
        %v168 = vpop.permute.xlu0 %167
        %v170 = vsub.f32 %v155, %v168
        %v171 = vmul.f32 %v164, 2.0
        %v172 = vmul.f32 %v165, 2.0
        %v173 = vmul.f32 %v170, 2.0
        %vm177 = vcmask 1046528
        %v178 = vrot.slane %v171, 1
        %v179 = vrot.slane %v172, 1
        %v180 = vsel %vm177, %v178, %v179
        %v181 = vrot.slane %v173, 1
        %v182 = vsel %vm177, %v179, %v181
        %v185 = vadd.f32 %v164, %v180
        %v186 = vadd.f32 %v165, %v182
        %vm187 = vcmask 1045504
        %v188 = vrot.slane %v153, 2
        %v189 = vrot.slane %v154, 2
        %v190 = vsel %vm187, %v188, %v189
        %v191 = vrot.slane %v155, 2
        %v192 = vsel %vm187, %v189, %v191
        %v195 = vadd.f32 %v185, %v190
        %v196 = vadd.f32 %v186, %v192
        %197 = vrot.lane.b32.xlu0 %v190, 2
        %v198 = vpop.permute.xlu0 %197
        %199 = vrot.lane.b32.xlu0 %v192, 2
        %v200 = vpop.permute.xlu0 %199
        %v203 = vsub.f32 %v195, %v198
        %v204 = vsub.f32 %v196, %v200
        %v205 = vmul.f32 %v153, 2.0
        %v206 = vmul.f32 %v154, 2.0
        %209 = vrot.lane.b32.xlu0 %v205, 127
        %v210 = vpop.permute.xlu0 %209
        %211 = vrot.lane.b32.xlu0 %v206, 127
        %v212 = vpop.permute.xlu0 %211
        %v215 = vadd.f32 %v153, %v210
        %v216 = vadd.f32 %v154, %v212
        %217 = vrot.lane.b32.xlu0 %v153, 126
        %v218 = vpop.permute.xlu0 %217
        %219 = vrot.lane.b32.xlu0 %v154, 126
        %v220 = vpop.permute.xlu0 %219
        %v223 = vadd.f32 %v215, %v218
        %v224 = vadd.f32 %v216, %v220
        %v225 = vsub.f32 %v223, %v190
        %v226 = vsub.f32 %v224, %v192
        %v227 = vmul.f32 %v155, 2.0
        %v229 = vrot.slane %v205, 2
        %v230 = vrot.slane %v206, 2
        %v231 = vsel %vm187, %v229, %v230
        %v232 = vrot.slane %v227, 2
        %v233 = vsel %vm187, %v230, %v232
        %234 = vrot.lane.b32.xlu0 %v231, 127
        %v235 = vpop.permute.xlu0 %234
        %236 = vrot.lane.b32.xlu0 %v233, 127
        %v237 = vpop.permute.xlu0 %236
        %v240 = vsub.f32 %v225, %v235
        %v241 = vsub.f32 %v226, %v237
        %242 = vrot.lane.b32.xlu0 %v190, 126
        %v243 = vpop.permute.xlu0 %242
        %244 = vrot.lane.b32.xlu0 %v192, 126
        %v245 = vpop.permute.xlu0 %244
        %v248 = vsub.f32 %v240, %v243
        %v249 = vsub.f32 %v241, %v245
        %v250 = vmul.f32 %v203, %v203
        %v251 = vmul.f32 %v204, %v204
        %v252 = vmul.f32 %v248, %v248
        %v253 = vmul.f32 %v249, %v249
        %256 = vrot.lane.b32.xlu0 %v252, 2
        %v257 = vpop.permute.xlu0 %256
        %258 = vrot.lane.b32.xlu0 %v253, 2
        %v259 = vpop.permute.xlu0 %258
        %v262 = vadd.f32 %v250, %v257
        %v263 = vadd.f32 %v251, %v259
        %v264 = vadd.f32 %v262, 1e-06
        %v265 = vadd.f32 %v263, 1e-06
        %v266 = vrsqrt.pop %v264
        %v267 = vmul.f32 %v264, %v266
        %vm268 = vcmp.eq.f32.partialorder %v264, inf
        %v269 = vsel %vm268, %v264, %v267
        %vm270 = vcmp.eq.f32.partialorder %v264, 0.0
        %v271 = vand.u32 %v264, 2147483648
        %v272 = vsel %vm270, %v271, %v269
        %v273 = vrsqrt.pop %v265
        %v274 = vmul.f32 %v265, %v273
        %vm275 = vcmp.eq.f32.partialorder %v265, inf
        %v276 = vsel %vm275, %v265, %v274
        %vm277 = vcmp.eq.f32.partialorder %v265, 0.0
        %v278 = vand.u32 %v265, 2147483648
        %v279 = vsel %vm277, %v278, %v276
        %v280 = vmul.f32 %v272, 0.125
        %v281 = vmul.f32 %v279, 0.125
        %284 = vrot.lane.b32.xlu0 %v280, 126
        %v285 = vpop.permute.xlu0 %284
        %286 = vrot.lane.b32.xlu0 %v281, 126
        %v287 = vpop.permute.xlu0 %286
        %vm290 = vcmask 130048
        %291 = vst.msk [vmem:[%s140] sm:$0xff] %vm290, %v285
        %292 = vst.msk [vmem:[%s140 + $0x8] sm:$0xff] %vm290, %v287
        %v293 = vmax.f32 %v153, 0.0
        %v294 = vmax.f32 %v154, 0.0
        %v295 = vmax.f32 %v155, 0.0
        %v296 = vadd.f32 %v293, 1.0
        %v297 = vadd.f32 %v294, 1.0
        %v298 = vadd.f32 %v295, 1.0
        %v299 = vlog2.pop %v296
        %v300 = vmul.f32 %v299, 0.6931472
        %v301 = vlog2.pop %v297
        %v302 = vmul.f32 %v301, 0.6931472
        %v303 = vlog2.pop %v298
        %v304 = vmul.f32 %v303, 0.6931472
        %307 = vrot.lane.b32.xlu0 %v300, 2
        %v308 = vpop.permute.xlu0 %307
        %309 = vrot.lane.b32.xlu0 %v302, 2
        %v310 = vpop.permute.xlu0 %309
        %v313 = vsub.f32 %v300, %v308
        %v314 = vsub.f32 %v302, %v310
        %316 = vrot.lane.b32.xlu0 %v304, 2
        %v317 = vpop.permute.xlu0 %316
        %v319 = vsub.f32 %v304, %v317
        %v320 = vmul.f32 %v313, 2.0
        %v321 = vmul.f32 %v314, 2.0
        %v322 = vmul.f32 %v319, 2.0
        %v326 = vrot.slane %v320, 1
        %v327 = vrot.slane %v321, 1
        %v328 = vsel %vm177, %v326, %v327
        %v329 = vrot.slane %v322, 1
        %v330 = vsel %vm177, %v327, %v329
        %v333 = vadd.f32 %v313, %v328
        %v334 = vadd.f32 %v314, %v330
        %v335 = vrot.slane %v300, 2
        %v336 = vrot.slane %v302, 2
        %v337 = vsel %vm187, %v335, %v336
        %v338 = vrot.slane %v304, 2
        %v339 = vsel %vm187, %v336, %v338
        %v342 = vadd.f32 %v333, %v337
        %v343 = vadd.f32 %v334, %v339
        %344 = vrot.lane.b32.xlu0 %v337, 2
        %v345 = vpop.permute.xlu0 %344
        %346 = vrot.lane.b32.xlu0 %v339, 2
        %v347 = vpop.permute.xlu0 %346
        %v350 = vsub.f32 %v342, %v345
        %v351 = vsub.f32 %v343, %v347
        %v352 = vmul.f32 %v300, 2.0
        %v353 = vmul.f32 %v302, 2.0
        %356 = vrot.lane.b32.xlu0 %v352, 127
        %v357 = vpop.permute.xlu0 %356
        %358 = vrot.lane.b32.xlu0 %v353, 127
        %v359 = vpop.permute.xlu0 %358
        %v362 = vadd.f32 %v300, %v357
        %v363 = vadd.f32 %v302, %v359
        %364 = vrot.lane.b32.xlu0 %v300, 126
        %v365 = vpop.permute.xlu0 %364
        %366 = vrot.lane.b32.xlu0 %v302, 126
        %v367 = vpop.permute.xlu0 %366
        %v370 = vadd.f32 %v362, %v365
        %v371 = vadd.f32 %v363, %v367
        %v372 = vsub.f32 %v370, %v337
        %v373 = vsub.f32 %v371, %v339
        %v374 = vmul.f32 %v304, 2.0
        %v376 = vrot.slane %v352, 2
        %v377 = vrot.slane %v353, 2
        %v378 = vsel %vm187, %v376, %v377
        %v379 = vrot.slane %v374, 2
        %v380 = vsel %vm187, %v377, %v379
        %381 = vrot.lane.b32.xlu0 %v378, 127
        %v382 = vpop.permute.xlu0 %381
        %383 = vrot.lane.b32.xlu0 %v380, 127
        %v384 = vpop.permute.xlu0 %383
        %v387 = vsub.f32 %v372, %v382
        %v388 = vsub.f32 %v373, %v384
        %389 = vrot.lane.b32.xlu0 %v337, 126
        %v390 = vpop.permute.xlu0 %389
        %391 = vrot.lane.b32.xlu0 %v339, 126
        %v392 = vpop.permute.xlu0 %391
        %v395 = vsub.f32 %v387, %v390
        %v396 = vsub.f32 %v388, %v392
        %v397 = vmul.f32 %v350, %v350
        %v398 = vmul.f32 %v351, %v351
        %v399 = vmul.f32 %v395, %v395
        %v400 = vmul.f32 %v396, %v396
        %403 = vrot.lane.b32.xlu0 %v399, 2
        %v404 = vpop.permute.xlu0 %403
        %405 = vrot.lane.b32.xlu0 %v400, 2
        %v406 = vpop.permute.xlu0 %405
        %v409 = vadd.f32 %v397, %v404
        %v410 = vadd.f32 %v398, %v406
        %v411 = vadd.f32 %v409, 1e-06
        %v412 = vadd.f32 %v410, 1e-06
        %v413 = vrsqrt.pop %v411
        %v414 = vmul.f32 %v411, %v413
        %vm415 = vcmp.eq.f32.partialorder %v411, inf
        %v416 = vsel %vm415, %v411, %v414
        %vm417 = vcmp.eq.f32.partialorder %v411, 0.0
        %v418 = vand.u32 %v411, 2147483648
        %v419 = vsel %vm417, %v418, %v416
        %v420 = vrsqrt.pop %v412
        %v421 = vmul.f32 %v412, %v420
        %vm422 = vcmp.eq.f32.partialorder %v412, inf
        %v423 = vsel %vm422, %v412, %v421
        %vm424 = vcmp.eq.f32.partialorder %v412, 0.0
        %v425 = vand.u32 %v412, 2147483648
        %v426 = vsel %vm424, %v425, %v423
        %429 = vrot.lane.b32.xlu0 %v419, 126
        %v430 = vpop.permute.xlu0 %429
        %431 = vrot.lane.b32.xlu0 %v426, 126
        %v432 = vpop.permute.xlu0 %431
        %435 = vst.msk [vmem:[%s147] sm:$0xff] %vm290, %v430
        %436 = vst.msk [vmem:[%s147 + $0x8] sm:$0xff] %vm290, %v432
        %s437 = sand.u32 %s54, 1
        %s438 = scalar_lea.sflag [#allocation3], %s437
        %s439 = sand.u32 %s54, 1
        %s440 = smul.addr %s439, 16
        %s441 = scalar_lea.vmem [#allocation2], %s440
        %s442 = sand.u32 %s80, 1
        %s443 = scalar_lea.sflag [#allocation5], %s442
        %s444 = sand.u32 %s80, 1
        %s445 = smul.addr %s444, 16
        %s446 = scalar_lea.vmem [#allocation4], %s445
        // Predicated region
        $region25: #{tpu_custom_call.1} parent=23 // pred_check
          %p447 = pneg %p64
        $region26: #{tpu_custom_call.1} parent=23 // pred_check_branch
          %449 = sbr.rel (%p447) target = $region28
        $region27: #{tpu_custom_call.1} parent=23 // pred_region
          %s451 = ssub.s32 256, 256
          %452 = vsyncadd %s438, %s451
          %s453 = smul.addr %s20, 2
          %s454 = smul.addr %s453, 128
          %s455 = scalar_lea.hbm %s1, %s454
          %s456 = sshll.u32 %s441, 4
          %s457 = int_to_ptr.vmem [resolvable:$true] %s456
          %462 = dma.vmem_to_hbm [thread:$0]  %s457, 256, %s455, %s438, 128, 128, 8
        $region28: #{tpu_custom_call.1} parent=23 // pred_fallthru
          _
        // Predicated region
        $region29: #{tpu_custom_call.1} parent=23 // pred_check
          %p463 = pneg %p90
        $region30: #{tpu_custom_call.1} parent=23 // pred_check_branch
          %465 = sbr.rel (%p463) target = $region32
        $region31: #{tpu_custom_call.1} parent=23 // pred_region
          %s467 = ssub.s32 256, 256
          %468 = vsyncadd %s443, %s467
          %s469 = smul.addr %s20, 2
          %s470 = smul.addr %s469, 128
          %s471 = scalar_lea.hbm %s2, %s470
          %s472 = sshll.u32 %s446, 4
          %s473 = int_to_ptr.vmem [resolvable:$true] %s472
          %478 = dma.vmem_to_hbm [thread:$0]  %s473, 256, %s471, %s443, 128, 128, 8
        $region32: #{tpu_custom_call.1} parent=23 // pred_fallthru
          _
      $region24: #{tpu_custom_call.1} parent=5 // pred_fallthru
        _
      %p479 = scmp.le.s32.totalorder 2, %s15
      // Predicated region
      $region33: #{tpu_custom_call.1} parent=5 // pred_check
        %p480 = pneg %p479
      $region34: #{tpu_custom_call.1} parent=5 // pred_check_branch
        %482 = sbr.rel (%p480) target = $region36
      $region35: #{tpu_custom_call.1} parent=5 // pred_region
        %s483 = ssub.s32 %s15, 2
        // Predicated region
        $region37: #{tpu_custom_call.1} parent=35 // pred_check
          %p484 = pneg %p70
        $region38: #{tpu_custom_call.1} parent=35 // pred_check_branch
          %486 = sbr.rel (%p484) target = $region40
        $region39: #{tpu_custom_call.1} parent=35 // pred_region
          %s487 = sand.u32 %s55, 1
          %s488 = scalar_lea.sflag [#allocation3], %s487
          %s489 = sand.u32 %s55, 1
          %s490 = smul.addr %s489, 16
          %s491 = scalar_lea.vmem [#allocation2], %s490
          %492 = dma.done %s488, 256
        $region40: #{tpu_custom_call.1} parent=35 // pred_fallthru
          _
        // Predicated region
        $region41: #{tpu_custom_call.1} parent=35 // pred_check
          %p493 = pneg %p96
        $region42: #{tpu_custom_call.1} parent=35 // pred_check_branch
          %495 = sbr.rel (%p493) target = $region44
        $region43: #{tpu_custom_call.1} parent=35 // pred_region
          %s496 = sand.u32 %s81, 1
          %s497 = scalar_lea.sflag [#allocation5], %s496
          %s498 = sand.u32 %s81, 1
          %s499 = smul.addr %s498, 16
          %s500 = scalar_lea.vmem [#allocation4], %s499
          %501 = dma.done %s497, 256
        $region44: #{tpu_custom_call.1} parent=35 // pred_fallthru
          _
      $region36: #{tpu_custom_call.1} parent=5 // pred_fallthru
        _
    $region6: #{tpu_custom_call.1} parent=1 // loop_footer
      %s19 = sadd.s32 1, %s15
    $region7: #{tpu_custom_call.1} parent=1 // loop_footer_branch
      %14 = sbr.rel target = $region3
    $region8: #{tpu_custom_call.1} parent=1 // loop_exit
      _
    %502 = vsyncpa [#allocation3], 1
    %s503 = scalar_lea.sflag [#allocation3], 1
    %504 = vsyncpa %s503, 1
    %505 = vsyncpa [#allocation5], 1
    %s506 = scalar_lea.sflag [#allocation5], 1
    %507 = vsyncpa %s506, 1

</llo_original>
